<compile_context>
chip_gen: v6e
topology: v6e:2x2x1
jax: 0.10.0
libtpu: 0.0.40
codegen_flags: <defaults>
</compile_context>

<pallas_src>
import jax
import jax.numpy as jnp
from jax import lax
from jax.experimental import pallas as pl

EPSILON = 1e-6          # matches the torch module's EPSILON / 1e-6 regularizer
OBS_NOISE_STD = 0.1


# ----------------------------------------------------------------------------
# Kernel 1: encoder pooling + encoder linear + latent_projection + reparam
# ----------------------------------------------------------------------------
def _encode_project_reparam_kernel(emb_ref, maskf_ref, invc_ref,
                                   we_ref, be_ref, wmu_ref, bmu_ref,
                                   wlv_ref, blv_ref, eps_ref,
                                   mu_ref, lv_ref, z_ref):
    # masked mean pool over the sequence axis
    pooled = jnp.sum(emb_ref[...] * maskf_ref[...], axis=1) * invc_ref[...]  # [B, H]
    enc = jnp.dot(pooled, we_ref[...],
                  preferred_element_type=jnp.float32) + be_ref[...]          # [B, L]
    # latent_projection Linear(L, 2L) is stored as two L->L maps so we never
    # slice a vreg at a non-128 lane boundary inside the kernel.
    mu = jnp.dot(enc, wmu_ref[...],
                 preferred_element_type=jnp.float32) + bmu_ref[...]          # [B, L]
    logvar = jnp.dot(enc, wlv_ref[...],
                     preferred_element_type=jnp.float32) + blv_ref[...]      # [B, L]
    mu_ref[...] = mu
    lv_ref[...] = logvar
    z_ref[...] = mu + eps_ref[...] * jnp.exp(0.5 * logvar)                   # reparam


def pallas_encode_project_reparam(emb, attention_mask, w_enc, b_enc,
                                  w_mu, b_mu, w_lv, b_lv, eps):
    B, S, H = emb.shape
    L = w_enc.shape[1]
    maskf = attention_mask.astype(jnp.float32)                               # [B, S]
    inv_cnt = 1.0 / jnp.maximum(maskf.sum(axis=1, keepdims=True), 1.0)       # [B, 1]
    return pl.pallas_call(
        _encode_project_reparam_kernel,
        out_shape=(jax.ShapeDtypeStruct((B, L), jnp.float32),   # mu
                   jax.ShapeDtypeStruct((B, L), jnp.float32),   # logvar
                   jax.ShapeDtypeStruct((B, L), jnp.float32)),  # latent_z
    )(emb, maskf[:, :, None], inv_cnt,
      w_enc, b_enc.reshape(1, L),
      w_mu, b_mu.reshape(1, L),
      w_lv, b_lv.reshape(1, L), eps)


# ----------------------------------------------------------------------------
# Kernel 2: fused memory write + read (direct_writing=True, episode_size=1),
# batched over B, with closed-form rank-1 pseudoinverse for the read.
# ----------------------------------------------------------------------------
def _memory_write_read_kernel(z_ref, obsn_ref, wn_ref, m_ref, minv_ref,
                              ret_ref, wread_ref, a_ref, zn_ref):
    z = z_ref[...]                          # [B, C]  clean latent (read query)
    zn = z + obsn_ref[...]                  # [B, C]  noisy write observation
    M = m_ref[...]                          # [K, C]  prior memory mean (shared)
    Minv = minv_ref[...]                    # [K, K]  (M M^T + 1e-6 I)^-1, hoisted

    # --- write: attention solve w = zn @ M^T @ Minv, all B rows in one MXU pass
    zMt = lax.dot_general(zn, M, (((1,), (1,)), ((), ())),
                          preferred_element_type=jnp.float32)                # [B, K]
    w_write = jnp.dot(zMt, Minv, preferred_element_type=jnp.float32)         # [B, K]
    # pinv of a single attention row is w^T / ||w||^2 (epsilon-guarded);
    # posterior memory mean for batch b is the rank-1 matrix a_b zn_b^T.
    wnorm2 = jnp.sum(w_write * w_write, axis=1, keepdims=True) + EPSILON     # [B, 1]
    a = w_write / wnorm2                                                     # [B, K]

    # --- read: solve against the rank-1 posterior memory in closed form.
    # MMT_post = ||zn||^2 a a^T, so (1e-6 I + MMT_post)^-1 applied to
    # q @ new_mean^T = (q.zn) a^T collapses (Sherman-Morrison) to:
    #   w_read = (q.zn) / (1e-6 + ||a||^2 ||zn||^2) * a
    qb = jnp.sum(z * zn, axis=1, keepdims=True)                              # [B, 1]
    a2 = jnp.sum(a * a, axis=1, keepdims=True)                               # [B, 1]
    b2 = jnp.sum(zn * zn, axis=1, keepdims=True)                             # [B, 1]
    w_read = (qb / (EPSILON + a2 * b2)) * a + wn_ref[...]                    # [B, K]
    # retrieved = w_read @ (a zn^T) = (w_read . a) zn
    coef = jnp.sum(w_read * a, axis=1, keepdims=True)                        # [B, 1]

    ret_ref[...] = coef * zn                                                 # [B, C]
    wread_ref[...] = w_read                                                  # [B, K]
    a_ref[...] = a                                                           # [B, K]
    zn_ref[...] = zn                                                         # [B, C]


def pallas_memory_write_read(latent_z, obs_noise, w_noise, mem_prior, mmt_prior_inv):
    B, C = latent_z.shape
    K = mem_prior.shape[0]
    return pl.pallas_call(
        _memory_write_read_kernel,
        out_shape=(jax.ShapeDtypeStruct((B, C), jnp.float32),   # retrieved z
                   jax.ShapeDtypeStruct((B, K), jnp.float32),   # read attention w
                   jax.ShapeDtypeStruct((B, K), jnp.float32),   # pinv rows (a)
                   jax.ShapeDtypeStruct((B, C), jnp.float32)),  # noisy obs (zn)
    )(latent_z, obs_noise, w_noise, mem_prior, mmt_prior_inv)


# ----------------------------------------------------------------------------
# Kernel 3: decoder = latent conditioning + single flattened vocab matmul
# ----------------------------------------------------------------------------
def _decoder_kernel(emb_ref, ret_ref, wc_ref, bc_ref, wv_ref, bv_ref, o_ref):
    cond = jnp.dot(ret_ref[...], wc_ref[...],
                   preferred_element_type=jnp.float32) + bc_ref[...]         # [B, H]
    hidden = emb_ref[...] + cond[:, None, :]                                 # [B, S, H]
    bsz, seq, hid = hidden.shape
    h2 = hidden.reshape(bsz * seq, hid).astype(jnp.bfloat16)                 # [B*S, H]
    o_ref[...] = (jnp.dot(h2, wv_ref[...],
                          preferred_element_type=jnp.float32) + bv_ref[...])  # [B*S, V]


def pallas_decoder(emb, retrieved, w_cond, b_cond, w_vocab, b_vocab):
    B, S, H = emb.shape
    V = w_vocab.shape[1]
    # TODO(synk): at realistic sizes (H~768, V~50k) add a V grid axis
    # ('parallel' -> second v7x TensorCore) with ~2-8K lane tiles and set
    # vmem_limit_bytes; untiled whole-array blocks are fine at these toy sizes.
    logits2d = pl.pallas_call(
        _decoder_kernel,
        out_shape=jax.ShapeDtypeStruct((B * S, V), jnp.float32),
    )(emb, retrieved, w_cond, b_cond.reshape(1, H),
      w_vocab.astype(jnp.bfloat16), b_vocab.reshape(1, V))
    return logits2d.reshape(B, S, V)


# ----------------------------------------------------------------------------
# Parameter initialization (deterministic, synthetic) and model glue
# ----------------------------------------------------------------------------
def init_params(key, vocab=64, hidden=32, latent=16, memory=32):
    ks = jax.random.split(key, 8)
    # TinyLarimarMemory(identity_init=True, memory_size >= code_size)
    memory_mean = jnp.concatenate(
        [jnp.eye(latent, dtype=jnp.float32),
         jnp.zeros((memory - latent, latent), jnp.float32)], axis=0)
    # Hoisted constant: (M M^T + 1e-6 I)^-1 depends only on memory_mean.
    # TODO(synk): torch.inverse has no Pallas primitive; computed once here in
    # plain JAX (recompute after optimizer steps if memory_mean trains).
    mmt = memory_mean @ memory_mean.T
    mmt_inv = jnp.linalg.inv(mmt + EPSILON * jnp.eye(memory, dtype=jnp.float32))
    return {
        # tiny synthetic encoder
        "token_emb": jax.random.normal(ks[0], (vocab, hidden), jnp.float32) * 0.02,
        "w_enc": jax.random.normal(ks[1], (hidden, latent), jnp.float32) * 0.1,
        "b_enc": jnp.zeros((latent,), jnp.float32),
        # LarimarMemoryVAE.latent_projection: Linear(latent, 2*latent), stored as
        # two latent->latent maps (mu half / logvar half of the fused weight).
        "w_proj_mu": jax.random.normal(ks[2], (latent, latent), jnp.float32) * 0.1,
        "b_proj_mu": jnp.zeros((latent,), jnp.float32),
        "w_proj_lv": jax.random.normal(ks[5], (latent, latent), jnp.float32) * 0.1,
        "b_proj_lv": jnp.zeros((latent,), jnp.float32),
        # TinyLarimarMemory parameters (+ hoisted derived constant)
        "memory_mean": memory_mean,
        "memory_mmt_inv": mmt_inv,
        "memory_logvar": jnp.zeros((1,), jnp.float32),
        "w_logvar": jnp.zeros((1,), jnp.float32),
        # tiny synthetic decoder
        "w_cond": jax.random.normal(ks[3], (latent, hidden), jnp.float32) * 0.1,
        "b_cond": jnp.zeros((hidden,), jnp.float32),
        "w_vocab": jax.random.normal(ks[4], (hidden, vocab), jnp.float32) * 0.1,
        "b_vocab": jnp.zeros((vocab,), jnp.float32),
    }


def larimar_memory_vae_forward(params, input_ids, attention_mask, labels, key):
    B, S = input_ids.shape
    latent = params["w_enc"].shape[1]
    K = params["memory_mean"].shape[0]
    k_eps, k_obs, k_read = jax.random.split(key, 3)

    # ---- embedding gather in JAX glue (no clean Pallas equivalent) ----
    emb = jnp.take(params["token_emb"], input_ids, axis=0)            # [B, S, H]

    # ---- kernel 1: encoder + latent_projection + reparameterize ----
    eps = jax.random.normal(k_eps, (B, latent), jnp.float32)
    mu, logvar, latent_z = pallas_encode_project_reparam(
        emb, attention_mask, params["w_enc"], params["b_enc"],
        params["w_proj_mu"], params["b_proj_mu"],
        params["w_proj_lv"], params["b_proj_lv"], eps)

    # ---- kernel 2: memory write (direct_writing) + read, fused & batched ----
    obs_noise = jax.random.normal(k_obs, (B, latent), jnp.float32) * OBS_NOISE_STD
    w_noise = (jax.random.normal(k_read, (B, K), jnp.float32)
               * jnp.exp(0.5 * params["w_logvar"][0]))                # w_logvar_setting=0
    retrieved, w_read, a_rows, z_noisy = pallas_memory_write_read(
        latent_z, obs_noise, w_noise,
        params["memory_mean"], params["memory_mmt_inv"])

    # posterior memory mean (rank-1 per batch) and memory KL; tiny fused XLA op.
    new_mean = a_rows[:, :, None] * z_noisy[:, None, :]               # [B, K, C]
    memory_kl = 0.5 * jnp.sum((new_mean - params["memory_mean"][None]) ** 2) / B

    # ---- kernel 3: decoder (conditioning + per-token vocab logits) ----
    logits = pallas_decoder(emb, retrieved, params["w_cond"], params["b_cond"],
                            params["w_vocab"], params["b_vocab"])     # [B, S, V]

    # reconstruction loss: token-level cross-entropy (scalar reductions in glue)
    logz = jax.nn.logsumexp(logits, axis=-1)                          # [B, S]
    gold = jnp.take_along_axis(logits, labels[..., None], axis=-1)[..., 0]
    reconstruction_loss = jnp.mean(logz - gold)

    kl_loss = -0.5 * jnp.sum(1.0 + logvar - mu ** 2 - jnp.exp(logvar)) / B
    total_loss = reconstruction_loss + kl_loss + memory_kl

    return {
        "loss": total_loss,
        "reconstruction_loss": reconstruction_loss,
        "kl_loss": kl_loss,
        "memory_kl": memory_kl,
        "logits": logits,
        "latent_z": retrieved,
        "mu": mu,
        "logvar": logvar,
        "attention_weights": w_read,
        "memory_mean_posterior": new_mean,
    }


if __name__ == "__main__":
    key = jax.random.PRNGKey(0)
    k_param, k_data, k_fwd = jax.random.split(key, 3)

    B, S, V, H, L, K = 2, 8, 64, 32, 16, 32  # latent_size=16, memory_size=32
    params = init_params(k_param, vocab=V, hidden=H, latent=L, memory=K)

    k_ids, k_lab = jax.random.split(k_data)
    input_ids = jax.random.randint(k_ids, (B, S), 0, V, dtype=jnp.int32)
    labels = jax.random.randint(k_lab, (B, S), 0, V, dtype=jnp.int32)
    attention_mask = jnp.ones((B, S), jnp.int32)

    forward = jax.jit(larimar_memory_vae_forward)
    out = forward(params, input_ids, attention_mask, labels, k_fwd)
    jax.tree_util.tree_map(jax.block_until_ready, out)
    print("KERNEL_OK")
</pallas_src>

<mosaic_0001>
module attributes {stable_mosaic.version = 11 : i64} {
  func.func @_encode_project_reparam_kernel(%arg0: memref<2x8x32xf32, #tpu.memory_space<vmem>>, %arg1: memref<2x8x1xf32, #tpu.memory_space<vmem>>, %arg2: memref<2x1xf32, #tpu.memory_space<vmem>>, %arg3: memref<32x16xf32, #tpu.memory_space<vmem>>, %arg4: memref<1x16xf32, #tpu.memory_space<vmem>>, %arg5: memref<16x16xf32, #tpu.memory_space<vmem>>, %arg6: memref<1x16xf32, #tpu.memory_space<vmem>>, %arg7: memref<16x16xf32, #tpu.memory_space<vmem>>, %arg8: memref<1x16xf32, #tpu.memory_space<vmem>>, %arg9: memref<2x16xf32, #tpu.memory_space<vmem>>, %arg10: memref<2x16xf32, #tpu.memory_space<vmem>>, %arg11: memref<2x16xf32, #tpu.memory_space<vmem>>, %arg12: memref<2x16xf32, #tpu.memory_space<vmem>>) attributes {dimension_semantics = [], scalar_prefetch = 0 : i64, scratch_operands = 0 : i64, tpu.core_type = #tpu.core_type<tc>} {
    %c0 = arith.constant 0 : index
    %c0_0 = arith.constant 0 : index
    %c0_1 = arith.constant 0 : index
    %0 = vector.load %arg0[%c0, %c0_0, %c0_1] : memref<2x8x32xf32, #tpu.memory_space<vmem>>, vector<2x8x32xf32>
    %c0_2 = arith.constant 0 : index
    %c0_3 = arith.constant 0 : index
    %c0_4 = arith.constant 0 : index
    %1 = vector.load %arg1[%c0_2, %c0_3, %c0_4] : memref<2x8x1xf32, #tpu.memory_space<vmem>>, vector<2x8x1xf32>
    %2 = vector.broadcast %1 : vector<2x8x1xf32> to vector<2x8x32xf32>
    %3 = arith.mulf %0, %2 : vector<2x8x32xf32>
    %cst = arith.constant dense<0.000000e+00> : vector<2x32xf32>
    %4 = vector.multi_reduction <add>, %3, %cst [1] : vector<2x8x32xf32> to vector<2x32xf32>
    %c0_5 = arith.constant 0 : index
    %c0_6 = arith.constant 0 : index
    %5 = vector.load %arg2[%c0_5, %c0_6] : memref<2x1xf32, #tpu.memory_space<vmem>>, vector<2x1xf32>
    %6 = vector.broadcast %5 : vector<2x1xf32> to vector<2x32xf32>
    %7 = arith.mulf %4, %6 : vector<2x32xf32>
    %c0_7 = arith.constant 0 : index
    %c0_8 = arith.constant 0 : index
    %8 = vector.load %arg3[%c0_7, %c0_8] : memref<32x16xf32, #tpu.memory_space<vmem>>, vector<32x16xf32>
    %cst_9 = arith.constant dense<0.000000e+00> : vector<2x16xf32>
    %9 = tpu.matmul %7, %8, %cst_9 {dimension_numbers = #tpu.dot_dimension_numbers<[1], [0], [0], [1], [0, 0, 1, 1], [], []>} : vector<2x32xf32>, vector<32x16xf32>, vector<2x16xf32> -> vector<2x16xf32>
    %c0_10 = arith.constant 0 : index
    %c0_11 = arith.constant 0 : index
    %10 = vector.load %arg4[%c0_10, %c0_11] : memref<1x16xf32, #tpu.memory_space<vmem>>, vector<1x16xf32>
    %11 = vector.broadcast %10 : vector<1x16xf32> to vector<2x16xf32>
    %12 = arith.addf %9, %11 : vector<2x16xf32>
    %c0_12 = arith.constant 0 : index
    %c0_13 = arith.constant 0 : index
    %13 = vector.load %arg5[%c0_12, %c0_13] : memref<16x16xf32, #tpu.memory_space<vmem>>, vector<16x16xf32>
    %cst_14 = arith.constant dense<0.000000e+00> : vector<2x16xf32>
    %14 = tpu.matmul %12, %13, %cst_14 {dimension_numbers = #tpu.dot_dimension_numbers<[1], [0], [0], [1], [0, 0, 1, 1], [], []>} : vector<2x16xf32>, vector<16x16xf32>, vector<2x16xf32> -> vector<2x16xf32>
    %c0_15 = arith.constant 0 : index
    %c0_16 = arith.constant 0 : index
    %15 = vector.load %arg6[%c0_15, %c0_16] : memref<1x16xf32, #tpu.memory_space<vmem>>, vector<1x16xf32>
    %16 = vector.broadcast %15 : vector<1x16xf32> to vector<2x16xf32>
    %17 = arith.addf %14, %16 : vector<2x16xf32>
    %c0_17 = arith.constant 0 : index
    %c0_18 = arith.constant 0 : index
    %18 = vector.load %arg7[%c0_17, %c0_18] : memref<16x16xf32, #tpu.memory_space<vmem>>, vector<16x16xf32>
    %cst_19 = arith.constant dense<0.000000e+00> : vector<2x16xf32>
    %19 = tpu.matmul %12, %18, %cst_19 {dimension_numbers = #tpu.dot_dimension_numbers<[1], [0], [0], [1], [0, 0, 1, 1], [], []>} : vector<2x16xf32>, vector<16x16xf32>, vector<2x16xf32> -> vector<2x16xf32>
    %c0_20 = arith.constant 0 : index
    %c0_21 = arith.constant 0 : index
    %20 = vector.load %arg8[%c0_20, %c0_21] : memref<1x16xf32, #tpu.memory_space<vmem>>, vector<1x16xf32>
    %21 = vector.broadcast %20 : vector<1x16xf32> to vector<2x16xf32>
    %22 = arith.addf %19, %21 : vector<2x16xf32>
    %c0_22 = arith.constant 0 : index
    %c0_23 = arith.constant 0 : index
    %23 = vector.load %arg10[%c0_22, %c0_23] : memref<2x16xf32, #tpu.memory_space<vmem>>, vector<2x16xf32>
    tpu.vector_store %arg10[%c0_22, %c0_23], %17 {strides = array<i32>} : memref<2x16xf32, #tpu.memory_space<vmem>>, vector<2x16xf32>,
    %c0_24 = arith.constant 0 : index
    %c0_25 = arith.constant 0 : index
    %24 = vector.load %arg11[%c0_24, %c0_25] : memref<2x16xf32, #tpu.memory_space<vmem>>, vector<2x16xf32>
    tpu.vector_store %arg11[%c0_24, %c0_25], %22 {strides = array<i32>} : memref<2x16xf32, #tpu.memory_space<vmem>>, vector<2x16xf32>,
    %c0_26 = arith.constant 0 : index
    %c0_27 = arith.constant 0 : index
    %25 = vector.load %arg9[%c0_26, %c0_27] : memref<2x16xf32, #tpu.memory_space<vmem>>, vector<2x16xf32>
    %cst_28 = arith.constant 5.000000e-01 : f32
    %26 = vector.broadcast %cst_28 : f32 to vector<2x16xf32>
    %27 = arith.mulf %26, %22 : vector<2x16xf32>
    %28 = math.exp %27 : vector<2x16xf32>
    %29 = arith.mulf %25, %28 : vector<2x16xf32>
    %30 = arith.addf %17, %29 : vector<2x16xf32>
    %c0_29 = arith.constant 0 : index
    %c0_30 = arith.constant 0 : index
    %31 = vector.load %arg12[%c0_29, %c0_30] : memref<2x16xf32, #tpu.memory_space<vmem>>, vector<2x16xf32>
    tpu.vector_store %arg12[%c0_29, %c0_30], %30 {strides = array<i32>} : memref<2x16xf32, #tpu.memory_space<vmem>>, vector<2x16xf32>,
    return
  }
}

module attributes {stable_mosaic.version = 11 : i64} {
  func.func @_memory_write_read_kernel(%arg0: memref<2x16xf32, #tpu.memory_space<vmem>>, %arg1: memref<2x16xf32, #tpu.memory_space<vmem>>, %arg2: memref<2x32xf32, #tpu.memory_space<vmem>>, %arg3: memref<32x16xf32, #tpu.memory_space<vmem>>, %arg4: memref<32x32xf32, #tpu.memory_space<vmem>>, %arg5: memref<2x16xf32, #tpu.memory_space<vmem>>, %arg6: memref<2x32xf32, #tpu.memory_space<vmem>>, %arg7: memref<2x32xf32, #tpu.memory_space<vmem>>, %arg8: memref<2x16xf32, #tpu.memory_space<vmem>>) attributes {dimension_semantics = [], scalar_prefetch = 0 : i64, scratch_operands = 0 : i64, tpu.core_type = #tpu.core_type<tc>} {
    %c0 = arith.constant 0 : index
    %c0_0 = arith.constant 0 : index
    %0 = vector.load %arg0[%c0, %c0_0] : memref<2x16xf32, #tpu.memory_space<vmem>>, vector<2x16xf32>
    %c0_1 = arith.constant 0 : index
    %c0_2 = arith.constant 0 : index
    %1 = vector.load %arg1[%c0_1, %c0_2] : memref<2x16xf32, #tpu.memory_space<vmem>>, vector<2x16xf32>
    %2 = arith.addf %0, %1 : vector<2x16xf32>
    %c0_3 = arith.constant 0 : index
    %c0_4 = arith.constant 0 : index
    %3 = vector.load %arg3[%c0_3, %c0_4] : memref<32x16xf32, #tpu.memory_space<vmem>>, vector<32x16xf32>
    %c0_5 = arith.constant 0 : index
    %c0_6 = arith.constant 0 : index
    %4 = vector.load %arg4[%c0_5, %c0_6] : memref<32x32xf32, #tpu.memory_space<vmem>>, vector<32x32xf32>
    %cst = arith.constant dense<0.000000e+00> : vector<2x32xf32>
    %5 = tpu.matmul %2, %3, %cst {dimension_numbers = #tpu.dot_dimension_numbers<[1], [1], [0], [0], [0, 0, 1, 0], [], []>} : vector<2x16xf32>, vector<32x16xf32>, vector<2x32xf32> -> vector<2x32xf32>
    %cst_7 = arith.constant dense<0.000000e+00> : vector<2x32xf32>
    %6 = tpu.matmul %5, %4, %cst_7 {dimension_numbers = #tpu.dot_dimension_numbers<[1], [0], [0], [1], [0, 0, 1, 1], [], []>} : vector<2x32xf32>, vector<32x32xf32>, vector<2x32xf32> -> vector<2x32xf32>
    %7 = arith.mulf %6, %6 : vector<2x32xf32>
    %cst_8 = arith.constant dense<0.000000e+00> : vector<2xf32>
    %8 = vector.multi_reduction <add>, %7, %cst_8 [1] : vector<2x32xf32> to vector<2xf32>
    %9 = vector.shape_cast %8 : vector<2xf32> to vector<2x1xf32>
    %cst_9 = arith.constant 9.99999997E-7 : f32
    %10 = vector.broadcast %cst_9 : f32 to vector<2x1xf32>
    %11 = arith.addf %9, %10 : vector<2x1xf32>
    %12 = vector.broadcast %11 : vector<2x1xf32> to vector<2x32xf32>
    %13 = arith.divf %6, %12 : vector<2x32xf32>
    %14 = arith.mulf %0, %2 : vector<2x16xf32>
    %cst_10 = arith.constant dense<0.000000e+00> : vector<2xf32>
    %15 = vector.multi_reduction <add>, %14, %cst_10 [1] : vector<2x16xf32> to vector<2xf32>
    %16 = vector.shape_cast %15 : vector<2xf32> to vector<2x1xf32>
    %17 = arith.mulf %13, %13 : vector<2x32xf32>
    %cst_11 = arith.constant dense<0.000000e+00> : vector<2xf32>
    %18 = vector.multi_reduction <add>, %17, %cst_11 [1] : vector<2x32xf32> to vector<2xf32>
    %19 = vector.shape_cast %18 : vector<2xf32> to vector<2x1xf32>
    %20 = arith.mulf %2, %2 : vector<2x16xf32>
    %cst_12 = arith.constant dense<0.000000e+00> : vector<2xf32>
    %21 = vector.multi_reduction <add>, %20, %cst_12 [1] : vector<2x16xf32> to vector<2xf32>
    %22 = vector.shape_cast %21 : vector<2xf32> to vector<2x1xf32>
    %23 = arith.mulf %19, %22 : vector<2x1xf32>
    %cst_13 = arith.constant 9.99999997E-7 : f32
    %24 = vector.broadcast %cst_13 : f32 to vector<2x1xf32>
    %25 = arith.addf %24, %23 : vector<2x1xf32>
    %26 = arith.divf %16, %25 : vector<2x1xf32>
    %27 = vector.broadcast %26 : vector<2x1xf32> to vector<2x32xf32>
    %28 = arith.mulf %27, %13 : vector<2x32xf32>
    %c0_14 = arith.constant 0 : index
    %c0_15 = arith.constant 0 : index
    %29 = vector.load %arg2[%c0_14, %c0_15] : memref<2x32xf32, #tpu.memory_space<vmem>>, vector<2x32xf32>
    %30 = arith.addf %28, %29 : vector<2x32xf32>
    %31 = arith.mulf %30, %13 : vector<2x32xf32>
    %cst_16 = arith.constant dense<0.000000e+00> : vector<2xf32>
    %32 = vector.multi_reduction <add>, %31, %cst_16 [1] : vector<2x32xf32> to vector<2xf32>
    %33 = vector.shape_cast %32 : vector<2xf32> to vector<2x1xf32>
    %34 = vector.broadcast %33 : vector<2x1xf32> to vector<2x16xf32>
    %35 = arith.mulf %34, %2 : vector<2x16xf32>
    %c0_17 = arith.constant 0 : index
    %c0_18 = arith.constant 0 : index
    %36 = vector.load %arg5[%c0_17, %c0_18] : memref<2x16xf32, #tpu.memory_space<vmem>>, vector<2x16xf32>
    tpu.vector_store %arg5[%c0_17, %c0_18], %35 {strides = array<i32>} : memref<2x16xf32, #tpu.memory_space<vmem>>, vector<2x16xf32>,
    %c0_19 = arith.constant 0 : index
    %c0_20 = arith.constant 0 : index
    %37 = vector.load %arg6[%c0_19, %c0_20] : memref<2x32xf32, #tpu.memory_space<vmem>>, vector<2x32xf32>
    tpu.vector_store %arg6[%c0_19, %c0_20], %30 {strides = array<i32>} : memref<2x32xf32, #tpu.memory_space<vmem>>, vector<2x32xf32>,
    %c0_21 = arith.constant 0 : index
    %c0_22 = arith.constant 0 : index
    %38 = vector.load %arg7[%c0_21, %c0_22] : memref<2x32xf32, #tpu.memory_space<vmem>>, vector<2x32xf32>
    tpu.vector_store %arg7[%c0_21, %c0_22], %13 {strides = array<i32>} : memref<2x32xf32, #tpu.memory_space<vmem>>, vector<2x32xf32>,
    %c0_23 = arith.constant 0 : index
    %c0_24 = arith.constant 0 : index
    %39 = vector.load %arg8[%c0_23, %c0_24] : memref<2x16xf32, #tpu.memory_space<vmem>>, vector<2x16xf32>
    tpu.vector_store %arg8[%c0_23, %c0_24], %2 {strides = array<i32>} : memref<2x16xf32, #tpu.memory_space<vmem>>, vector<2x16xf32>,
    return
  }
}

module attributes {stable_mosaic.version = 11 : i64} {
  func.func @_decoder_kernel(%arg0: memref<2x8x32xf32, #tpu.memory_space<vmem>>, %arg1: memref<2x16xf32, #tpu.memory_space<vmem>>, %arg2: memref<16x32xf32, #tpu.memory_space<vmem>>, %arg3: memref<1x32xf32, #tpu.memory_space<vmem>>, %arg4: memref<32x64xbf16, #tpu.memory_space<vmem>>, %arg5: memref<1x64xf32, #tpu.memory_space<vmem>>, %arg6: memref<16x64xf32, #tpu.memory_space<vmem>>) attributes {dimension_semantics = [], scalar_prefetch = 0 : i64, scratch_operands = 0 : i64, tpu.core_type = #tpu.core_type<tc>} {
    %c0 = arith.constant 0 : index
    %c0_0 = arith.constant 0 : index
    %0 = vector.load %arg1[%c0, %c0_0] : memref<2x16xf32, #tpu.memory_space<vmem>>, vector<2x16xf32>
    %c0_1 = arith.constant 0 : index
    %c0_2 = arith.constant 0 : index
    %1 = vector.load %arg2[%c0_1, %c0_2] : memref<16x32xf32, #tpu.memory_space<vmem>>, vector<16x32xf32>
    %cst = arith.constant dense<0.000000e+00> : vector<2x32xf32>
    %2 = tpu.matmul %0, %1, %cst {dimension_numbers = #tpu.dot_dimension_numbers<[1], [0], [0], [1], [0, 0, 1, 1], [], []>} : vector<2x16xf32>, vector<16x32xf32>, vector<2x32xf32> -> vector<2x32xf32>
    %c0_3 = arith.constant 0 : index
    %c0_4 = arith.constant 0 : index
    %3 = vector.load %arg3[%c0_3, %c0_4] : memref<1x32xf32, #tpu.memory_space<vmem>>, vector<1x32xf32>
    %4 = vector.broadcast %3 : vector<1x32xf32> to vector<2x32xf32>
    %5 = arith.addf %2, %4 : vector<2x32xf32>
    %c0_5 = arith.constant 0 : index
    %c0_6 = arith.constant 0 : index
    %c0_7 = arith.constant 0 : index
    %6 = vector.load %arg0[%c0_5, %c0_6, %c0_7] : memref<2x8x32xf32, #tpu.memory_space<vmem>>, vector<2x8x32xf32>
    %7 = vector.shape_cast %5 : vector<2x32xf32> to vector<2x1x32xf32>
    %8 = vector.broadcast %7 : vector<2x1x32xf32> to vector<2x8x32xf32>
    %9 = arith.addf %6, %8 : vector<2x8x32xf32>
    %10 = vector.shape_cast %9 : vector<2x8x32xf32> to vector<16x32xf32>
    %11 = arith.truncf %10 : vector<16x32xf32> to vector<16x32xbf16>
    %c0_8 = arith.constant 0 : index
    %c0_9 = arith.constant 0 : index
    %12 = vector.load %arg4[%c0_8, %c0_9] : memref<32x64xbf16, #tpu.memory_space<vmem>>, vector<32x64xbf16>
    %cst_10 = arith.constant dense<0.000000e+00> : vector<16x64xf32>
    %13 = tpu.matmul %11, %12, %cst_10 {dimension_numbers = #tpu.dot_dimension_numbers<[1], [0], [0], [1], [0, 0, 1, 1], [], []>} : vector<16x32xbf16>, vector<32x64xbf16>, vector<16x64xf32> -> vector<16x64xf32>
    %c0_11 = arith.constant 0 : index
    %c0_12 = arith.constant 0 : index
    %14 = vector.load %arg5[%c0_11, %c0_12] : memref<1x64xf32, #tpu.memory_space<vmem>>, vector<1x64xf32>
    %15 = vector.broadcast %14 : vector<1x64xf32> to vector<16x64xf32>
    %16 = arith.addf %13, %15 : vector<16x64xf32>
    %c0_13 = arith.constant 0 : index
    %c0_14 = arith.constant 0 : index
    %17 = vector.load %arg6[%c0_13, %c0_14] : memref<16x64xf32, #tpu.memory_space<vmem>>, vector<16x64xf32>
    tpu.vector_store %arg6[%c0_13, %c0_14], %16 {strides = array<i32>} : memref<16x64xf32, #tpu.memory_space<vmem>>, vector<16x64xf32>,
    return
  }
}

</mosaic_0001>

<llo_original>
// kernel: larimar_memory_vae_forward.5
$region0: #{larimar_memory_vae_forward.5}
  #allocation0 [shape = 'u32[]', space=smem, size = 0x4, offset = 0x4, fixed_abs, tag = 'smem constant byte address 0x4 - core index']
  #allocation1 [shape = 'u32[144,128]{1,0:T(1,128)}', space=vmem, size = 0x12000, scoped, tag = 'internal scratch']
  %s0 = inlined_call_operand.vmem [shape: f32[2,8,32], index: 0, kind: input, shape index: {}]
  %s1 = inlined_call_operand.vmem [shape: f32[2,8,1], index: 1, kind: input, shape index: {}]
  %s2 = inlined_call_operand.vmem [shape: f32[2,1], index: 2, kind: input, shape index: {}]
  %s3 = inlined_call_operand.vmem [shape: f32[32,16], index: 3, kind: input, shape index: {}]
  %s4 = inlined_call_operand.vmem [shape: f32[1,16], index: 4, kind: input, shape index: {}]
  %s5 = inlined_call_operand.vmem [shape: f32[16,16], index: 5, kind: input, shape index: {}]
  %s6 = inlined_call_operand.vmem [shape: f32[1,16], index: 6, kind: input, shape index: {}]
  %s7 = inlined_call_operand.vmem [shape: f32[16,16], index: 7, kind: input, shape index: {}]
  %s8 = inlined_call_operand.vmem [shape: f32[1,16], index: 8, kind: input, shape index: {}]
  %s9 = inlined_call_operand.vmem [shape: f32[2,16], index: 9, kind: input, shape index: {}]
  %s10 = inlined_call_operand.vmem [shape: f32[2,16], index: 10, kind: output, shape index: {0}]
  %s11 = inlined_call_operand.vmem [shape: f32[2,16], index: 11, kind: output, shape index: {1}]
  %s12 = inlined_call_operand.vmem [shape: f32[2,16], index: 12, kind: output, shape index: {2}]
  %13 = xla_tuple %s10, %s11, %s12
  %s14 = sld [smem:[#allocation0]]
  $region66: #{larimar_memory_vae_forward.5} parent=0
    _
  %s16 = ssub.s32 1, %s14
  %s17 = scalar_select 0, %s16, %s14
  // Predicated region
  $region2: #{larimar_memory_vae_forward.5} parent=0 // pred_check
    _
  $region3: #{larimar_memory_vae_forward.5} parent=0 // pred_check_branch
    %19 = sbr.rel (0) target = $region5
  $region4: #{larimar_memory_vae_forward.5} parent=0 // pred_region
    _
  $region5: #{larimar_memory_vae_forward.5} parent=0 // pred_fallthru
    _
  // Predicated region
  $region6: #{larimar_memory_vae_forward.5} parent=0 // pred_check
    _
  $region7: #{larimar_memory_vae_forward.5} parent=0 // pred_check_branch
    %21 = sbr.rel (0) target = $region9
  $region8: #{larimar_memory_vae_forward.5} parent=0 // pred_region
    _
  $region9: #{larimar_memory_vae_forward.5} parent=0 // pred_fallthru
    _
  // Predicated region
  $region10: #{larimar_memory_vae_forward.5} parent=0 // pred_check
    _
  $region11: #{larimar_memory_vae_forward.5} parent=0 // pred_check_branch
    %23 = sbr.rel (0) target = $region13
  $region12: #{larimar_memory_vae_forward.5} parent=0 // pred_region
    _
  $region13: #{larimar_memory_vae_forward.5} parent=0 // pred_fallthru
    _
  // Predicated region
  $region14: #{larimar_memory_vae_forward.5} parent=0 // pred_check
    _
  $region15: #{larimar_memory_vae_forward.5} parent=0 // pred_check_branch
    %25 = sbr.rel (0) target = $region17
  $region16: #{larimar_memory_vae_forward.5} parent=0 // pred_region
    _
  $region17: #{larimar_memory_vae_forward.5} parent=0 // pred_fallthru
    _
  // Predicated region
  $region18: #{larimar_memory_vae_forward.5} parent=0 // pred_check
    _
  $region19: #{larimar_memory_vae_forward.5} parent=0 // pred_check_branch
    %27 = sbr.rel (0) target = $region21
  $region20: #{larimar_memory_vae_forward.5} parent=0 // pred_region
    _
  $region21: #{larimar_memory_vae_forward.5} parent=0 // pred_fallthru
    _
  // Predicated region
  $region22: #{larimar_memory_vae_forward.5} parent=0 // pred_check
    _
  $region23: #{larimar_memory_vae_forward.5} parent=0 // pred_check_branch
    %29 = sbr.rel (0) target = $region25
  $region24: #{larimar_memory_vae_forward.5} parent=0 // pred_region
    _
  $region25: #{larimar_memory_vae_forward.5} parent=0 // pred_fallthru
    _
  // Predicated region
  $region26: #{larimar_memory_vae_forward.5} parent=0 // pred_check
    _
  $region27: #{larimar_memory_vae_forward.5} parent=0 // pred_check_branch
    %31 = sbr.rel (0) target = $region29
  $region28: #{larimar_memory_vae_forward.5} parent=0 // pred_region
    _
  $region29: #{larimar_memory_vae_forward.5} parent=0 // pred_fallthru
    _
  // Predicated region
  $region30: #{larimar_memory_vae_forward.5} parent=0 // pred_check
    _
  $region31: #{larimar_memory_vae_forward.5} parent=0 // pred_check_branch
    %33 = sbr.rel (0) target = $region33
  $region32: #{larimar_memory_vae_forward.5} parent=0 // pred_region
    _
  $region33: #{larimar_memory_vae_forward.5} parent=0 // pred_fallthru
    _
  // Predicated region
  $region34: #{larimar_memory_vae_forward.5} parent=0 // pred_check
    _
  $region35: #{larimar_memory_vae_forward.5} parent=0 // pred_check_branch
    %35 = sbr.rel (0) target = $region37
  $region36: #{larimar_memory_vae_forward.5} parent=0 // pred_region
    _
  $region37: #{larimar_memory_vae_forward.5} parent=0 // pred_fallthru
    _
  // Predicated region
  $region38: #{larimar_memory_vae_forward.5} parent=0 // pred_check
    _
  $region39: #{larimar_memory_vae_forward.5} parent=0 // pred_check_branch
    %37 = sbr.rel (0) target = $region41
  $region40: #{larimar_memory_vae_forward.5} parent=0 // pred_region
    _
  $region41: #{larimar_memory_vae_forward.5} parent=0 // pred_fallthru
    _
  %v38 = vld [vmem:[%s0] sm:$0xff]
  %v39 = vld [vmem:[%s0 + $0x8] sm:$0xff]
  %v40 = vld [vmem:[%s1] sm:$0xff]
  %v41 = vld [vmem:[%s1 + $0x8] sm:$0xff]
  %43 = vset.pattern.permute.xlu0 0
  %44 = vperm.xlu0 %43, %v40
  %v45 = vpop.permute.xlu0 %44
  %48 = vset.pattern.permute.xlu0 0
  %49 = vperm.xlu0 %48, %v41
  %v50 = vpop.permute.xlu0 %49
  %v52 = vmul.f32 %v38, %v45
  %v53 = vmul.f32 %v39, %v50
  %vm54 = vcmask 261120
  %v55 = vsel %vm54, %v52, 0.0
  %v56 = vrot.slane %v55, 4
  %v57 = vadd.f32 %v55, %v56
  %v58 = vrot.slane %v57, 2
  %v59 = vadd.f32 %v57, %v58
  %v60 = vrot.slane %v59, 1
  %v61 = vadd.f32 %v59, %v60
  %v62 = vsel %vm54, %v53, 0.0
  %v63 = vrot.slane %v62, 4
  %v64 = vadd.f32 %v62, %v63
  %v65 = vrot.slane %v64, 2
  %v66 = vadd.f32 %v64, %v65
  %v67 = vrot.slane %v66, 1
  %v68 = vadd.f32 %v66, %v67
  %v69 = vld [vmem:[%s2] sm:$0x3]
  %71 = vset.pattern.permute.xlu0 0
  %72 = vperm.xlu0 %71, %v69
  %v73 = vpop.permute.xlu0 %72
  %v74 = vrot.slane %v73, 1
  %v77 = vmul.f32 %v61, %v73
  %v78 = vmul.f32 %v68, %v74
  %v79 = vld [vmem:[%s3] sm:$0xff]
  %v80 = vld [vmem:[%s3 + $0x8] sm:$0xff]
  %v81 = vld [vmem:[%s3 + $0x10] sm:$0xff]
  %v82 = vld [vmem:[%s3 + $0x18] sm:$0xff]
  %v83 = vld [vmem:[%s4] sm:$0x1]
  %v85 = vlaneseq
  %v86 = vshrl.u32 %v85, 7
  %v87 = vsub.s32 0, %v86
  %v88 = vrot.slane %v83, %v87
  %v92 = vrot.slane %v78, 7
  %vm93 = vcmask 1041409
  %v94 = vsel %vm93, %v92, %v77
  %v95 = vsel %vm54, %v94, 0
  %97 = vmatprep.subr.mxu0 0.0
  %98 = vmatpush1.msra.mxu0 0.0
  %99 = vmatprep.subr.mxu0 0.0
  %100 = vmatpush1.msra.mxu0 0.0
  %101 = vmatprep.subr.mxu0 0.0
  %102 = vmatpush1.msra.mxu0 0.0
  %103 = vmatprep.subr.mxu0 0.0
  %104 = vmatpush1.msra.mxu0 0.0
  %105 = vmatprep.subr.mxu0 0.0
  %106 = vmatpush1.msra.mxu0 0.0
  %107 = vmatprep.subr.mxu0 0.0
  %108 = vmatpush1.msra.mxu0 0.0
  %109 = vmatprep.subr.mxu0 0.0
  %110 = vmatpush1.msra.mxu0 0.0
  %111 = vmatprep.subr.mxu0 0.0
  %112 = vmatpush1.msra.mxu0 0.0
  %113 = vmatprep.subr.mxu0 0.0
  %114 = vmatpush1.msra.mxu0 0.0
  %115 = vmatprep.subr.mxu0 0.0
  %116 = vmatpush1.msra.mxu0 0.0
  %117 = vmatprep.subr.mxu0 0.0
  %118 = vmatpush1.msra.mxu0 0.0
  %119 = vmatprep.subr.mxu0 0.0
  %120 = vmatpush1.msra.mxu0 0.0
  %121 = vmatprep.subr.mxu0 0.0
  %122 = vmatpush1.msra.mxu0 %v82
  %123 = vmatprep.subr.mxu0 0.0
  %124 = vmatpush1.msra.mxu0 %v81
  %125 = vmatprep.subr.mxu0 0.0
  %126 = vmatpush1.msra.mxu0 %v80
  %127 = vmatprep.subr.mxu0 0.0
  %128 = vmatpush1.msra.mxu0 %v79
  %129 = vmatprep.subr.mxu0 0.0
  %130 = vmatpush2.msra.mxu0 0.0
  %131 = vmatprep.subr.mxu0 0.0
  %132 = vmatpush2.msra.mxu0 0.0
  %133 = vmatprep.subr.mxu0 0.0
  %134 = vmatpush2.msra.mxu0 0.0
  %135 = vmatprep.subr.mxu0 0.0
  %136 = vmatpush2.msra.mxu0 0.0
  %137 = vmatprep.subr.mxu0 0.0
  %138 = vmatpush2.msra.mxu0 0.0
  %139 = vmatprep.subr.mxu0 0.0
  %140 = vmatpush2.msra.mxu0 0.0
  %141 = vmatprep.subr.mxu0 0.0
  %142 = vmatpush2.msra.mxu0 0.0
  %143 = vmatprep.subr.mxu0 0.0
  %144 = vmatpush2.msra.mxu0 0.0
  %145 = vmatprep.subr.mxu0 0.0
  %146 = vmatpush2.msra.mxu0 0.0
  %147 = vmatprep.subr.mxu0 0.0
  %148 = vmatpush2.msra.mxu0 0.0
  %149 = vmatprep.subr.mxu0 0.0
  %150 = vmatpush2.msra.mxu0 0.0
  %151 = vmatprep.subr.mxu0 0.0
  %152 = vmatpush2.msra.mxu0 0.0
  %153 = vmatprep.subr.mxu0 0.0
  %154 = vmatpush2.msra.mxu0 0.0
  %155 = vmatprep.subr.mxu0 0.0
  %156 = vmatpush2.msra.mxu0 0.0
  %157 = vmatprep.subr.mxu0 0.0
  %158 = vmatpush2.msra.mxu0 0.0
  %159 = vmatprep.subr.mxu0 0.0
  %160 = vmatpush2.msra.mxu0 0.0
  %161 = vmatprep.mubr.f32.mxu0 0.0
  %162 = vmatmul.mubr.f32.gmra.mxu0 %v95
  %v163 = vpop.f32.mrf.mxu0
  %v164 = vadd.f32 %v88, %v163
  %v165 = vpop.f32.mrf.mxu0
  %166 = vdwg.mxu0
  %v167 = vld [vmem:[%s5] sm:$0xff]
  %v168 = vld [vmem:[%s5 + $0x8] sm:$0xff]
  %v169 = vld [vmem:[%s6] sm:$0x1]
  %v171 = vlaneseq
  %v172 = vshrl.u32 %v171, 7
  %v173 = vsub.s32 0, %v172
  %v174 = vrot.slane %v169, %v173
  %vm176 = vcmask 130048
  %v178 = vsel %vm176, %v164, 0
  %180 = vmatprep.subr.mxu0 0.0
  %181 = vmatpush1.msra.mxu0 0.0
  %182 = vmatprep.subr.mxu0 0.0
  %183 = vmatpush1.msra.mxu0 0.0
  %184 = vmatprep.subr.mxu0 0.0
  %185 = vmatpush1.msra.mxu0 0.0
  %186 = vmatprep.subr.mxu0 0.0
  %187 = vmatpush1.msra.mxu0 0.0
  %188 = vmatprep.subr.mxu0 0.0
  %189 = vmatpush1.msra.mxu0 0.0
  %190 = vmatprep.subr.mxu0 0.0
  %191 = vmatpush1.msra.mxu0 0.0
  %192 = vmatprep.subr.mxu0 0.0
  %193 = vmatpush1.msra.mxu0 0.0
  %194 = vmatprep.subr.mxu0 0.0
  %195 = vmatpush1.msra.mxu0 0.0
  %196 = vmatprep.subr.mxu0 0.0
  %197 = vmatpush1.msra.mxu0 0.0
  %198 = vmatprep.subr.mxu0 0.0
  %199 = vmatpush1.msra.mxu0 0.0
  %200 = vmatprep.subr.mxu0 0.0
  %201 = vmatpush1.msra.mxu0 0.0
  %202 = vmatprep.subr.mxu0 0.0
  %203 = vmatpush1.msra.mxu0 0.0
  %204 = vmatprep.subr.mxu0 0.0
  %205 = vmatpush1.msra.mxu0 0.0
  %206 = vmatprep.subr.mxu0 0.0
  %207 = vmatpush1.msra.mxu0 0.0
  %208 = vmatprep.subr.mxu0 0.0
  %209 = vmatpush1.msra.mxu0 %v168
  %210 = vmatprep.subr.mxu0 0.0
  %211 = vmatpush1.msra.mxu0 %v167
  %212 = vmatprep.subr.mxu0 0.0
  %213 = vmatpush2.msra.mxu0 0.0
  %214 = vmatprep.subr.mxu0 0.0
  %215 = vmatpush2.msra.mxu0 0.0
  %216 = vmatprep.subr.mxu0 0.0
  %217 = vmatpush2.msra.mxu0 0.0
  %218 = vmatprep.subr.mxu0 0.0
  %219 = vmatpush2.msra.mxu0 0.0
  %220 = vmatprep.subr.mxu0 0.0
  %221 = vmatpush2.msra.mxu0 0.0
  %222 = vmatprep.subr.mxu0 0.0
  %223 = vmatpush2.msra.mxu0 0.0
  %224 = vmatprep.subr.mxu0 0.0
  %225 = vmatpush2.msra.mxu0 0.0
  %226 = vmatprep.subr.mxu0 0.0
  %227 = vmatpush2.msra.mxu0 0.0
  %228 = vmatprep.subr.mxu0 0.0
  %229 = vmatpush2.msra.mxu0 0.0
  %230 = vmatprep.subr.mxu0 0.0
  %231 = vmatpush2.msra.mxu0 0.0
  %232 = vmatprep.subr.mxu0 0.0
  %233 = vmatpush2.msra.mxu0 0.0
  %234 = vmatprep.subr.mxu0 0.0
  %235 = vmatpush2.msra.mxu0 0.0
  %236 = vmatprep.subr.mxu0 0.0
  %237 = vmatpush2.msra.mxu0 0.0
  %238 = vmatprep.subr.mxu0 0.0
  %239 = vmatpush2.msra.mxu0 0.0
  %240 = vmatprep.subr.mxu0 0.0
  %241 = vmatpush2.msra.mxu0 0.0
  %242 = vmatprep.subr.mxu0 0.0
  %243 = vmatpush2.msra.mxu0 0.0
  %244 = vmatprep.mubr.f32.mxu0 0.0
  %245 = vmatmul.mubr.f32.gmra.mxu0 %v178
  %v246 = vpop.f32.mrf.mxu0
  %v247 = vadd.f32 %v174, %v246
  %v248 = vpop.f32.mrf.mxu0
  %249 = vdwg.mxu0
  %v250 = vld [vmem:[%s7] sm:$0xff]
  %v251 = vld [vmem:[%s7 + $0x8] sm:$0xff]
  %v252 = vld [vmem:[%s8] sm:$0x1]
  %v254 = vlaneseq
  %v255 = vshrl.u32 %v254, 7
  %v256 = vsub.s32 0, %v255
  %v257 = vrot.slane %v252, %v256
  %259 = vmatprep.subr.mxu0 0.0
  %260 = vmatpush1.msra.mxu0 0.0
  %261 = vmatprep.subr.mxu0 0.0
  %262 = vmatpush1.msra.mxu0 0.0
  %263 = vmatprep.subr.mxu0 0.0
  %264 = vmatpush1.msra.mxu0 0.0
  %265 = vmatprep.subr.mxu0 0.0
  %266 = vmatpush1.msra.mxu0 0.0
  %267 = vmatprep.subr.mxu0 0.0
  %268 = vmatpush1.msra.mxu0 0.0
  %269 = vmatprep.subr.mxu0 0.0
  %270 = vmatpush1.msra.mxu0 0.0
  %271 = vmatprep.subr.mxu0 0.0
  %272 = vmatpush1.msra.mxu0 0.0
  %273 = vmatprep.subr.mxu0 0.0
  %274 = vmatpush1.msra.mxu0 0.0
  %275 = vmatprep.subr.mxu0 0.0
  %276 = vmatpush1.msra.mxu0 0.0
  %277 = vmatprep.subr.mxu0 0.0
  %278 = vmatpush1.msra.mxu0 0.0
  %279 = vmatprep.subr.mxu0 0.0
  %280 = vmatpush1.msra.mxu0 0.0
  %281 = vmatprep.subr.mxu0 0.0
  %282 = vmatpush1.msra.mxu0 0.0
  %283 = vmatprep.subr.mxu0 0.0
  %284 = vmatpush1.msra.mxu0 0.0
  %285 = vmatprep.subr.mxu0 0.0
  %286 = vmatpush1.msra.mxu0 0.0
  %287 = vmatprep.subr.mxu0 0.0
  %288 = vmatpush1.msra.mxu0 %v251
  %289 = vmatprep.subr.mxu0 0.0
  %290 = vmatpush1.msra.mxu0 %v250
  %291 = vmatprep.subr.mxu0 0.0
  %292 = vmatpush2.msra.mxu0 0.0
  %293 = vmatprep.subr.mxu0 0.0
  %294 = vmatpush2.msra.mxu0 0.0
  %295 = vmatprep.subr.mxu0 0.0
  %296 = vmatpush2.msra.mxu0 0.0
  %297 = vmatprep.subr.mxu0 0.0
  %298 = vmatpush2.msra.mxu0 0.0
  %299 = vmatprep.subr.mxu0 0.0
  %300 = vmatpush2.msra.mxu0 0.0
  %301 = vmatprep.subr.mxu0 0.0
  %302 = vmatpush2.msra.mxu0 0.0
  %303 = vmatprep.subr.mxu0 0.0
  %304 = vmatpush2.msra.mxu0 0.0
  %305 = vmatprep.subr.mxu0 0.0
  %306 = vmatpush2.msra.mxu0 0.0
  %307 = vmatprep.subr.mxu0 0.0
  %308 = vmatpush2.msra.mxu0 0.0
  %309 = vmatprep.subr.mxu0 0.0
  %310 = vmatpush2.msra.mxu0 0.0
  %311 = vmatprep.subr.mxu0 0.0
  %312 = vmatpush2.msra.mxu0 0.0
  %313 = vmatprep.subr.mxu0 0.0
  %314 = vmatpush2.msra.mxu0 0.0
  %315 = vmatprep.subr.mxu0 0.0
  %316 = vmatpush2.msra.mxu0 0.0
  %317 = vmatprep.subr.mxu0 0.0
  %318 = vmatpush2.msra.mxu0 0.0
  %319 = vmatprep.subr.mxu0 0.0
  %320 = vmatpush2.msra.mxu0 0.0
  %321 = vmatprep.subr.mxu0 0.0
  %322 = vmatpush2.msra.mxu0 0.0
  %323 = vmatprep.mubr.f32.mxu0 0.0
  %324 = vmatmul.mubr.f32.gmra.mxu0 %v178
  %v325 = vpop.f32.mrf.mxu0
  %v326 = vadd.f32 %v257, %v325
  %v327 = vpop.f32.mrf.mxu0
  %328 = vdwg.mxu0
  %vm329 = vcmask 123904
  %330 = vst.msk [vmem:[%s10] sm:$0x3] %vm329, %v247
  %331 = vst.msk [vmem:[%s11] sm:$0x3] %vm329, %v326
  %v332 = vld [vmem:[%s9] sm:$0x3]
  %v333 = vmul.f32 %v326, 0.5
  %v334 = vmul.f32 %v333, 1.442695
  %v335 = vpow.pop %v334
  %v336 = vmul.f32 %v332, %v335
  %v337 = vadd.f32 %v247, %v336
  %338 = vst.msk [vmem:[%s12] sm:$0x3] %vm329, %v337
  // Predicated region
  $region42: #{larimar_memory_vae_forward.5} parent=0 // pred_check
    _
  $region43: #{larimar_memory_vae_forward.5} parent=0 // pred_check_branch
    %340 = sbr.rel (0) target = $region45
  $region44: #{larimar_memory_vae_forward.5} parent=0 // pred_region
    _
  $region45: #{larimar_memory_vae_forward.5} parent=0 // pred_fallthru
    _
  // Predicated region
  $region46: #{larimar_memory_vae_forward.5} parent=0 // pred_check
    _
  $region47: #{larimar_memory_vae_forward.5} parent=0 // pred_check_branch
    %342 = sbr.rel (0) target = $region49
  $region48: #{larimar_memory_vae_forward.5} parent=0 // pred_region
    _
  $region49: #{larimar_memory_vae_forward.5} parent=0 // pred_fallthru
    _
  // Predicated region
  $region50: #{larimar_memory_vae_forward.5} parent=0 // pred_check
    _
  $region51: #{larimar_memory_vae_forward.5} parent=0 // pred_check_branch
    %344 = sbr.rel (0) target = $region53
  $region52: #{larimar_memory_vae_forward.5} parent=0 // pred_region
    _
  $region53: #{larimar_memory_vae_forward.5} parent=0 // pred_fallthru
    _
  // Predicated region
  $region54: #{larimar_memory_vae_forward.5} parent=0 // pred_check
    _
  $region55: #{larimar_memory_vae_forward.5} parent=0 // pred_check_branch
    %346 = sbr.rel (0) target = $region57
  $region56: #{larimar_memory_vae_forward.5} parent=0 // pred_region
    _
  $region57: #{larimar_memory_vae_forward.5} parent=0 // pred_fallthru
    _
  // Predicated region
  $region58: #{larimar_memory_vae_forward.5} parent=0 // pred_check
    _
  $region59: #{larimar_memory_vae_forward.5} parent=0 // pred_check_branch
    %348 = sbr.rel (0) target = $region61
  $region60: #{larimar_memory_vae_forward.5} parent=0 // pred_region
    _
  $region61: #{larimar_memory_vae_forward.5} parent=0 // pred_fallthru
    _
  // Predicated region
  $region62: #{larimar_memory_vae_forward.5} parent=0 // pred_check
    _
  $region63: #{larimar_memory_vae_forward.5} parent=0 // pred_check_branch
    %350 = sbr.rel (0) target = $region65
  $region64: #{larimar_memory_vae_forward.5} parent=0 // pred_region
    _
  $region65: #{larimar_memory_vae_forward.5} parent=0 // pred_fallthru
    _

// kernel: larimar_memory_vae_forward.6
$region0: #{larimar_memory_vae_forward.6}
  #allocation0 [shape = 'u32[]', space=smem, size = 0x4, offset = 0x4, fixed_abs, tag = 'smem constant byte address 0x4 - core index']
  #allocation1 [shape = 'u32[144,128]{1,0:T(1,128)}', space=vmem, size = 0x12000, scoped, tag = 'internal scratch']
  %s0 = inlined_call_operand.vmem [shape: f32[2,16], index: 0, kind: input, shape index: {}]
  %s1 = inlined_call_operand.vmem [shape: f32[2,16], index: 1, kind: input, shape index: {}]
  %s2 = inlined_call_operand.vmem [shape: f32[2,32], index: 2, kind: input, shape index: {}]
  %s3 = inlined_call_operand.vmem [shape: f32[32,16], index: 3, kind: input, shape index: {}]
  %s4 = inlined_call_operand.vmem [shape: f32[32,32], index: 4, kind: input, shape index: {}]
  %s5 = inlined_call_operand.vmem [shape: f32[2,16], index: 5, kind: output, shape index: {0}]
  %s6 = inlined_call_operand.hbm [shape: f32[2,32], index: 6, kind: output, shape index: {1}]
  %s7 = inlined_call_operand.vmem [shape: f32[2,32], index: 7, kind: output, shape index: {2}]
  %s8 = inlined_call_operand.vmem [shape: f32[2,16], index: 8, kind: output, shape index: {3}]
  %9 = xla_tuple %s5, %s6, %s7, %s8
  %s10 = sld [smem:[#allocation0]]
  $region54: #{larimar_memory_vae_forward.6} parent=0
    _
  %s12 = ssub.s32 1, %s10
  %s13 = scalar_select 0, %s12, %s10
  $region1: #{larimar_memory_vae_forward.6} parent=0
    #allocation2 [shape = 'u8[1024]{0}', space=vmem, size = 0x400, scoped, tag = 'output window, operand 1, single buffered']
    #allocation3 [shape = 's32[1]{0}', space=sflag, size = 0x4, scoped, tag = 'scoped memory for larimar_memory_vae_forward.6']
    %14 = vsyncpa [#allocation3], 0
    // Predicated region
    $region2: #{larimar_memory_vae_forward.6} parent=1 // pred_check
      _
    $region3: #{larimar_memory_vae_forward.6} parent=1 // pred_check_branch
      %16 = sbr.rel (0) target = $region5
    $region4: #{larimar_memory_vae_forward.6} parent=1 // pred_region
      _
    $region5: #{larimar_memory_vae_forward.6} parent=1 // pred_fallthru
      _
    // Predicated region
    $region6: #{larimar_memory_vae_forward.6} parent=1 // pred_check
      _
    $region7: #{larimar_memory_vae_forward.6} parent=1 // pred_check_branch
      %18 = sbr.rel (0) target = $region9
    $region8: #{larimar_memory_vae_forward.6} parent=1 // pred_region
      _
    $region9: #{larimar_memory_vae_forward.6} parent=1 // pred_fallthru
      _
    // Predicated region
    $region10: #{larimar_memory_vae_forward.6} parent=1 // pred_check
      _
    $region11: #{larimar_memory_vae_forward.6} parent=1 // pred_check_branch
      %20 = sbr.rel (0) target = $region13
    $region12: #{larimar_memory_vae_forward.6} parent=1 // pred_region
      _
    $region13: #{larimar_memory_vae_forward.6} parent=1 // pred_fallthru
      _
    // Predicated region
    $region14: #{larimar_memory_vae_forward.6} parent=1 // pred_check
      _
    $region15: #{larimar_memory_vae_forward.6} parent=1 // pred_check_branch
      %22 = sbr.rel (0) target = $region17
    $region16: #{larimar_memory_vae_forward.6} parent=1 // pred_region
      _
    $region17: #{larimar_memory_vae_forward.6} parent=1 // pred_fallthru
      _
    // Predicated region
    $region18: #{larimar_memory_vae_forward.6} parent=1 // pred_check
      _
    $region19: #{larimar_memory_vae_forward.6} parent=1 // pred_check_branch
      %24 = sbr.rel (0) target = $region21
    $region20: #{larimar_memory_vae_forward.6} parent=1 // pred_region
      _
    $region21: #{larimar_memory_vae_forward.6} parent=1 // pred_fallthru
      _
    %v25 = vld [vmem:[%s0] sm:$0x3]
    %v26 = vld [vmem:[%s1] sm:$0x3]
    %v27 = vadd.f32 %v25, %v26
    %v28 = vld [vmem:[%s3] sm:$0xff]
    %v29 = vld [vmem:[%s3 + $0x8] sm:$0xff]
    %v30 = vld [vmem:[%s3 + $0x10] sm:$0xff]
    %v31 = vld [vmem:[%s3 + $0x18] sm:$0xff]
    %v32 = vld [vmem:[%s4] sm:$0xff]
    %v33 = vld [vmem:[%s4 + $0x8] sm:$0xff]
    %v34 = vld [vmem:[%s4 + $0x10] sm:$0xff]
    %v35 = vld [vmem:[%s4 + $0x18] sm:$0xff]
    %vm36 = vcmask 130048
    %v38 = vsel %vm36, %v27, 0
    %v41 = vsel %vm36, %v28, 0
    %v44 = vsel %vm36, %v29, 0
    %v47 = vsel %vm36, %v30, 0
    %v50 = vsel %vm36, %v31, 0
    %52 = vmatprep.subr.mxu0 0.0
    %53 = vmatpush1.xpose.msra.mxu0 0.0
    %54 = vmatprep.subr.mxu0 0.0
    %55 = vmatpush1.xpose.msra.mxu0 0.0
    %56 = vmatprep.subr.mxu0 0.0
    %57 = vmatpush1.xpose.msra.mxu0 0.0
    %58 = vmatprep.subr.mxu0 0.0
    %59 = vmatpush1.xpose.msra.mxu0 0.0
    %60 = vmatprep.subr.mxu0 0.0
    %61 = vmatpush1.xpose.msra.mxu0 0.0
    %62 = vmatprep.subr.mxu0 0.0
    %63 = vmatpush1.xpose.msra.mxu0 0.0
    %64 = vmatprep.subr.mxu0 0.0
    %65 = vmatpush1.xpose.msra.mxu0 0.0
    %66 = vmatprep.subr.mxu0 0.0
    %67 = vmatpush1.xpose.msra.mxu0 0.0
    %68 = vmatprep.subr.mxu0 0.0
    %69 = vmatpush1.xpose.msra.mxu0 0.0
    %70 = vmatprep.subr.mxu0 0.0
    %71 = vmatpush1.xpose.msra.mxu0 0.0
    %72 = vmatprep.subr.mxu0 0.0
    %73 = vmatpush1.xpose.msra.mxu0 0.0
    %74 = vmatprep.subr.mxu0 0.0
    %75 = vmatpush1.xpose.msra.mxu0 0.0
    %76 = vmatprep.subr.mxu0 0.0
    %77 = vmatpush1.xpose.msra.mxu0 %v50
    %78 = vmatprep.subr.mxu0 0.0
    %79 = vmatpush1.xpose.msra.mxu0 %v47
    %80 = vmatprep.subr.mxu0 0.0
    %81 = vmatpush1.xpose.msra.mxu0 %v44
    %82 = vmatprep.subr.mxu0 0.0
    %83 = vmatpush1.xpose.msra.mxu0 %v41
    %84 = vmatprep.subr.mxu0 0.0
    %85 = vmatpush2.xpose.msra.mxu0 0.0
    %86 = vmatprep.subr.mxu0 0.0
    %87 = vmatpush2.xpose.msra.mxu0 0.0
    %88 = vmatprep.subr.mxu0 0.0
    %89 = vmatpush2.xpose.msra.mxu0 0.0
    %90 = vmatprep.subr.mxu0 0.0
    %91 = vmatpush2.xpose.msra.mxu0 0.0
    %92 = vmatprep.subr.mxu0 0.0
    %93 = vmatpush2.xpose.msra.mxu0 0.0
    %94 = vmatprep.subr.mxu0 0.0
    %95 = vmatpush2.xpose.msra.mxu0 0.0
    %96 = vmatprep.subr.mxu0 0.0
    %97 = vmatpush2.xpose.msra.mxu0 0.0
    %98 = vmatprep.subr.mxu0 0.0
    %99 = vmatpush2.xpose.msra.mxu0 0.0
    %100 = vmatprep.subr.mxu0 0.0
    %101 = vmatpush2.xpose.msra.mxu0 0.0
    %102 = vmatprep.subr.mxu0 0.0
    %103 = vmatpush2.xpose.msra.mxu0 0.0
    %104 = vmatprep.subr.mxu0 0.0
    %105 = vmatpush2.xpose.msra.mxu0 0.0
    %106 = vmatprep.subr.mxu0 0.0
    %107 = vmatpush2.xpose.msra.mxu0 0.0
    %108 = vmatprep.subr.mxu0 0.0
    %109 = vmatpush2.xpose.msra.mxu0 0.0
    %110 = vmatprep.subr.mxu0 0.0
    %111 = vmatpush2.xpose.msra.mxu0 0.0
    %112 = vmatprep.subr.mxu0 0.0
    %113 = vmatpush2.xpose.msra.mxu0 0.0
    %114 = vmatprep.subr.mxu0 0.0
    %115 = vmatpush2.xpose.msra.mxu0 0.0
    %116 = vmatprep.mubr.f32.mxu0 0.0
    %117 = vmatmul.mubr.f32.gmra.mxu0 %v38
    %v118 = vpop.f32.mrf.mxu0
    %v119 = vadd.f32 0.0, %v118
    %v120 = vpop.f32.mrf.mxu0
    %121 = vdwg.mxu0
    %vm122 = vcmask 261120
    %v124 = vsel %vm122, %v119, 0
    %126 = vmatprep.subr.mxu0 0.0
    %127 = vmatpush1.msra.mxu0 0.0
    %128 = vmatprep.subr.mxu0 0.0
    %129 = vmatpush1.msra.mxu0 0.0
    %130 = vmatprep.subr.mxu0 0.0
    %131 = vmatpush1.msra.mxu0 0.0
    %132 = vmatprep.subr.mxu0 0.0
    %133 = vmatpush1.msra.mxu0 0.0
    %134 = vmatprep.subr.mxu0 0.0
    %135 = vmatpush1.msra.mxu0 0.0
    %136 = vmatprep.subr.mxu0 0.0
    %137 = vmatpush1.msra.mxu0 0.0
    %138 = vmatprep.subr.mxu0 0.0
    %139 = vmatpush1.msra.mxu0 0.0
    %140 = vmatprep.subr.mxu0 0.0
    %141 = vmatpush1.msra.mxu0 0.0
    %142 = vmatprep.subr.mxu0 0.0
    %143 = vmatpush1.msra.mxu0 0.0
    %144 = vmatprep.subr.mxu0 0.0
    %145 = vmatpush1.msra.mxu0 0.0
    %146 = vmatprep.subr.mxu0 0.0
    %147 = vmatpush1.msra.mxu0 0.0
    %148 = vmatprep.subr.mxu0 0.0
    %149 = vmatpush1.msra.mxu0 0.0
    %150 = vmatprep.subr.mxu0 0.0
    %151 = vmatpush1.msra.mxu0 %v35
    %152 = vmatprep.subr.mxu0 0.0
    %153 = vmatpush1.msra.mxu0 %v34
    %154 = vmatprep.subr.mxu0 0.0
    %155 = vmatpush1.msra.mxu0 %v33
    %156 = vmatprep.subr.mxu0 0.0
    %157 = vmatpush1.msra.mxu0 %v32
    %158 = vmatprep.subr.mxu0 0.0
    %159 = vmatpush2.msra.mxu0 0.0
    %160 = vmatprep.subr.mxu0 0.0
    %161 = vmatpush2.msra.mxu0 0.0
    %162 = vmatprep.subr.mxu0 0.0
    %163 = vmatpush2.msra.mxu0 0.0
    %164 = vmatprep.subr.mxu0 0.0
    %165 = vmatpush2.msra.mxu0 0.0
    %166 = vmatprep.subr.mxu0 0.0
    %167 = vmatpush2.msra.mxu0 0.0
    %168 = vmatprep.subr.mxu0 0.0
    %169 = vmatpush2.msra.mxu0 0.0
    %170 = vmatprep.subr.mxu0 0.0
    %171 = vmatpush2.msra.mxu0 0.0
    %172 = vmatprep.subr.mxu0 0.0
    %173 = vmatpush2.msra.mxu0 0.0
    %174 = vmatprep.subr.mxu0 0.0
    %175 = vmatpush2.msra.mxu0 0.0
    %176 = vmatprep.subr.mxu0 0.0
    %177 = vmatpush2.msra.mxu0 0.0
    %178 = vmatprep.subr.mxu0 0.0
    %179 = vmatpush2.msra.mxu0 0.0
    %180 = vmatprep.subr.mxu0 0.0
    %181 = vmatpush2.msra.mxu0 0.0
    %182 = vmatprep.subr.mxu0 0.0
    %183 = vmatpush2.msra.mxu0 0.0
    %184 = vmatprep.subr.mxu0 0.0
    %185 = vmatpush2.msra.mxu0 0.0
    %186 = vmatprep.subr.mxu0 0.0
    %187 = vmatpush2.msra.mxu0 0.0
    %188 = vmatprep.subr.mxu0 0.0
    %189 = vmatpush2.msra.mxu0 0.0
    %190 = vmatprep.mubr.f32.mxu0 0.0
    %191 = vmatmul.mubr.f32.gmra.mxu0 %v124
    %v192 = vpop.f32.mrf.mxu0
    %v193 = vadd.f32 0.0, %v192
    %v194 = vpop.f32.mrf.mxu0
    %195 = vdwg.mxu0
    %v196 = vmul.f32 %v193, %v193
    %vm197 = vcmask 254976
    %v198 = vsel %vm197, %v196, 0.0
    %199 = vadd.xlane.f32.xlu0 %v198
    %v200 = vpop.xlane.xlu0 %199
    %v201 = vadd.f32 %v200, 1e-06
    %v202 = vrcp.pop %v201
    %v203 = vmul.f32 %v193, %v202
    %v204 = vmul.f32 %v25, %v27
    %vm205 = vcmask 123904
    %v206 = vsel %vm205, %v204, 0.0
    %207 = vadd.xlane.f32.xlu0 %v206
    %v208 = vpop.xlane.xlu0 %207
    %v209 = vmul.f32 %v203, %v203
    %v210 = vsel %vm197, %v209, 0.0
    %211 = vadd.xlane.f32.xlu0 %v210
    %v212 = vpop.xlane.xlu0 %211
    %v213 = vmul.f32 %v27, %v27
    %v214 = vsel %vm205, %v213, 0.0
    %215 = vadd.xlane.f32.xlu0 %v214
    %v216 = vpop.xlane.xlu0 %215
    %v217 = vmul.f32 %v212, %v216
    %v218 = vadd.f32 %v217, 1e-06
    %v219 = vrcp.pop %v218
    %v220 = vmul.f32 %v208, %v219
    %v221 = vmul.f32 %v220, %v203
    %v222 = vld [vmem:[%s2] sm:$0x3]
    %v223 = vadd.f32 %v221, %v222
    %v224 = vmul.f32 %v223, %v203
    %v225 = vsel %vm197, %v224, 0.0
    %226 = vadd.xlane.f32.xlu0 %v225
    %v227 = vpop.xlane.xlu0 %226
    %v228 = vmul.f32 %v227, %v27
    %229 = vst.msk [vmem:[%s5] sm:$0x3] %vm205, %v228
    %230 = vst.msk [vmem:[#allocation2] sm:$0x3] %vm197, %v223
    %231 = vst.msk [vmem:[%s7] sm:$0x3] %vm197, %v203
    %232 = vst.msk [vmem:[%s8] sm:$0x3] %vm205, %v27
    // Predicated region
    $region22: #{larimar_memory_vae_forward.6} parent=1 // pred_check
      _
    $region23: #{larimar_memory_vae_forward.6} parent=1 // pred_check_branch
      %234 = sbr.rel (0) target = $region25
    $region24: #{larimar_memory_vae_forward.6} parent=1 // pred_region
      _
    $region25: #{larimar_memory_vae_forward.6} parent=1 // pred_fallthru
      _
    // Predicated region
    $region26: #{larimar_memory_vae_forward.6} parent=1 // pred_check
      _
    $region27: #{larimar_memory_vae_forward.6} parent=1 // pred_check_branch
      %236 = sbr.rel (0) target = $region29
    $region28: #{larimar_memory_vae_forward.6} parent=1 // pred_region
      %s238 = ssub.s32 32, 32
      %239 = vsyncadd [#allocation3], %s238
      %s241 = sshll.u32 [#allocation2], 4
      %s242 = int_to_ptr.vmem [resolvable:$true] %s241
      %244 = dma.vmem_to_hbm [thread:$0]  %s242, 32, %s6, [#allocation3]
    $region29: #{larimar_memory_vae_forward.6} parent=1 // pred_fallthru
      _
    // Predicated region
    $region30: #{larimar_memory_vae_forward.6} parent=1 // pred_check
      _
    $region31: #{larimar_memory_vae_forward.6} parent=1 // pred_check_branch
      %246 = sbr.rel (0) target = $region33
    $region32: #{larimar_memory_vae_forward.6} parent=1 // pred_region
      _
    $region33: #{larimar_memory_vae_forward.6} parent=1 // pred_fallthru
      _
    // Predicated region
    $region34: #{larimar_memory_vae_forward.6} parent=1 // pred_check
      _
    $region35: #{larimar_memory_vae_forward.6} parent=1 // pred_check_branch
      %248 = sbr.rel (0) target = $region37
    $region36: #{larimar_memory_vae_forward.6} parent=1 // pred_region
      _
    $region37: #{larimar_memory_vae_forward.6} parent=1 // pred_fallthru
      _
    // Predicated region
    $region38: #{larimar_memory_vae_forward.6} parent=1 // pred_check
      _
    $region39: #{larimar_memory_vae_forward.6} parent=1 // pred_check_branch
      %250 = sbr.rel (0) target = $region41
    $region40: #{larimar_memory_vae_forward.6} parent=1 // pred_region
      _
    $region41: #{larimar_memory_vae_forward.6} parent=1 // pred_fallthru
      _
    // Predicated region
    $region42: #{larimar_memory_vae_forward.6} parent=1 // pred_check
      _
    $region43: #{larimar_memory_vae_forward.6} parent=1 // pred_check_branch
      %252 = sbr.rel (0) target = $region45
    $region44: #{larimar_memory_vae_forward.6} parent=1 // pred_region
      %253 = dma.done [#allocation3], 32
    $region45: #{larimar_memory_vae_forward.6} parent=1 // pred_fallthru
      _
    // Predicated region
    $region46: #{larimar_memory_vae_forward.6} parent=1 // pred_check
      _
    $region47: #{larimar_memory_vae_forward.6} parent=1 // pred_check_branch
      %255 = sbr.rel (0) target = $region49
    $region48: #{larimar_memory_vae_forward.6} parent=1 // pred_region
      _
    $region49: #{larimar_memory_vae_forward.6} parent=1 // pred_fallthru
      _
    // Predicated region
    $region50: #{larimar_memory_vae_forward.6} parent=1 // pred_check
      _
    $region51: #{larimar_memory_vae_forward.6} parent=1 // pred_check_branch
      %257 = sbr.rel (0) target = $region53
    $region52: #{larimar_memory_vae_forward.6} parent=1 // pred_region
      _
    $region53: #{larimar_memory_vae_forward.6} parent=1 // pred_fallthru
      _
    %258 = vsyncpa [#allocation3], 1

// kernel: larimar_memory_vae_forward.7
$region0: #{larimar_memory_vae_forward.7}
  #allocation0 [shape = 'u32[]', space=smem, size = 0x4, offset = 0x4, fixed_abs, tag = 'smem constant byte address 0x4 - core index']
  #allocation1 [shape = 'u32[144,128]{1,0:T(1,128)}', space=vmem, size = 0x12000, scoped, tag = 'internal scratch']
  %s0 = inlined_call_operand.vmem [shape: f32[2,8,32], index: 0, kind: input, shape index: {}]
  %s1 = inlined_call_operand.vmem [shape: f32[2,16], index: 1, kind: input, shape index: {}]
  %s2 = inlined_call_operand.vmem [shape: f32[16,32], index: 2, kind: input, shape index: {}]
  %s3 = inlined_call_operand.vmem [shape: f32[1,32], index: 3, kind: input, shape index: {}]
  %s4 = inlined_call_operand.vmem [shape: bf16[32,64], index: 4, kind: input, shape index: {}]
  %s5 = inlined_call_operand.vmem [shape: f32[1,64], index: 5, kind: input, shape index: {}]
  %s6 = inlined_call_operand.vmem [shape: f32[16,64], index: 6, kind: output, shape index: {}]
  %s7 = sld [smem:[#allocation0]]
  $region34: #{larimar_memory_vae_forward.7} parent=0
    _
  %s9 = ssub.s32 1, %s7
  %s10 = scalar_select 0, %s9, %s7
  // Predicated region
  $region2: #{larimar_memory_vae_forward.7} parent=0 // pred_check
    _
  $region3: #{larimar_memory_vae_forward.7} parent=0 // pred_check_branch
    %12 = sbr.rel (0) target = $region5
  $region4: #{larimar_memory_vae_forward.7} parent=0 // pred_region
    _
  $region5: #{larimar_memory_vae_forward.7} parent=0 // pred_fallthru
    _
  // Predicated region
  $region6: #{larimar_memory_vae_forward.7} parent=0 // pred_check
    _
  $region7: #{larimar_memory_vae_forward.7} parent=0 // pred_check_branch
    %14 = sbr.rel (0) target = $region9
  $region8: #{larimar_memory_vae_forward.7} parent=0 // pred_region
    _
  $region9: #{larimar_memory_vae_forward.7} parent=0 // pred_fallthru
    _
  // Predicated region
  $region10: #{larimar_memory_vae_forward.7} parent=0 // pred_check
    _
  $region11: #{larimar_memory_vae_forward.7} parent=0 // pred_check_branch
    %16 = sbr.rel (0) target = $region13
  $region12: #{larimar_memory_vae_forward.7} parent=0 // pred_region
    _
  $region13: #{larimar_memory_vae_forward.7} parent=0 // pred_fallthru
    _
  // Predicated region
  $region14: #{larimar_memory_vae_forward.7} parent=0 // pred_check
    _
  $region15: #{larimar_memory_vae_forward.7} parent=0 // pred_check_branch
    %18 = sbr.rel (0) target = $region17
  $region16: #{larimar_memory_vae_forward.7} parent=0 // pred_region
    _
  $region17: #{larimar_memory_vae_forward.7} parent=0 // pred_fallthru
    _
  // Predicated region
  $region18: #{larimar_memory_vae_forward.7} parent=0 // pred_check
    _
  $region19: #{larimar_memory_vae_forward.7} parent=0 // pred_check_branch
    %20 = sbr.rel (0) target = $region21
  $region20: #{larimar_memory_vae_forward.7} parent=0 // pred_region
    _
  $region21: #{larimar_memory_vae_forward.7} parent=0 // pred_fallthru
    _
  // Predicated region
  $region22: #{larimar_memory_vae_forward.7} parent=0 // pred_check
    _
  $region23: #{larimar_memory_vae_forward.7} parent=0 // pred_check_branch
    %22 = sbr.rel (0) target = $region25
  $region24: #{larimar_memory_vae_forward.7} parent=0 // pred_region
    _
  $region25: #{larimar_memory_vae_forward.7} parent=0 // pred_fallthru
    _
  %v24 = vld [vmem:[%s1] sm:$0x3]
  %v25 = vld [vmem:[%s2] sm:$0xff]
  %v26 = vld [vmem:[%s2 + $0x8] sm:$0xff]
  %v27 = vld [vmem:[%s3] sm:$0x1]
  %v29 = vlaneseq
  %v30 = vshrl.u32 %v29, 7
  %v31 = vsub.s32 0, %v30
  %v32 = vrot.slane %v27, %v31
  %vm34 = vcmask 130048
  %v36 = vsel %vm34, %v24, 0
  %38 = vmatprep.subr.mxu0 0.0
  %39 = vmatpush1.msra.mxu0 0.0
  %40 = vmatprep.subr.mxu0 0.0
  %41 = vmatpush1.msra.mxu0 0.0
  %42 = vmatprep.subr.mxu0 0.0
  %43 = vmatpush1.msra.mxu0 0.0
  %44 = vmatprep.subr.mxu0 0.0
  %45 = vmatpush1.msra.mxu0 0.0
  %46 = vmatprep.subr.mxu0 0.0
  %47 = vmatpush1.msra.mxu0 0.0
  %48 = vmatprep.subr.mxu0 0.0
  %49 = vmatpush1.msra.mxu0 0.0
  %50 = vmatprep.subr.mxu0 0.0
  %51 = vmatpush1.msra.mxu0 0.0
  %52 = vmatprep.subr.mxu0 0.0
  %53 = vmatpush1.msra.mxu0 0.0
  %54 = vmatprep.subr.mxu0 0.0
  %55 = vmatpush1.msra.mxu0 0.0
  %56 = vmatprep.subr.mxu0 0.0
  %57 = vmatpush1.msra.mxu0 0.0
  %58 = vmatprep.subr.mxu0 0.0
  %59 = vmatpush1.msra.mxu0 0.0
  %60 = vmatprep.subr.mxu0 0.0
  %61 = vmatpush1.msra.mxu0 0.0
  %62 = vmatprep.subr.mxu0 0.0
  %63 = vmatpush1.msra.mxu0 0.0
  %64 = vmatprep.subr.mxu0 0.0
  %65 = vmatpush1.msra.mxu0 0.0
  %66 = vmatprep.subr.mxu0 0.0
  %67 = vmatpush1.msra.mxu0 %v26
  %68 = vmatprep.subr.mxu0 0.0
  %69 = vmatpush1.msra.mxu0 %v25
  %70 = vmatprep.subr.mxu0 0.0
  %71 = vmatpush2.msra.mxu0 0.0
  %72 = vmatprep.subr.mxu0 0.0
  %73 = vmatpush2.msra.mxu0 0.0
  %74 = vmatprep.subr.mxu0 0.0
  %75 = vmatpush2.msra.mxu0 0.0
  %76 = vmatprep.subr.mxu0 0.0
  %77 = vmatpush2.msra.mxu0 0.0
  %78 = vmatprep.subr.mxu0 0.0
  %79 = vmatpush2.msra.mxu0 0.0
  %80 = vmatprep.subr.mxu0 0.0
  %81 = vmatpush2.msra.mxu0 0.0
  %82 = vmatprep.subr.mxu0 0.0
  %83 = vmatpush2.msra.mxu0 0.0
  %84 = vmatprep.subr.mxu0 0.0
  %85 = vmatpush2.msra.mxu0 0.0
  %86 = vmatprep.subr.mxu0 0.0
  %87 = vmatpush2.msra.mxu0 0.0
  %88 = vmatprep.subr.mxu0 0.0
  %89 = vmatpush2.msra.mxu0 0.0
  %90 = vmatprep.subr.mxu0 0.0
  %91 = vmatpush2.msra.mxu0 0.0
  %92 = vmatprep.subr.mxu0 0.0
  %93 = vmatpush2.msra.mxu0 0.0
  %94 = vmatprep.subr.mxu0 0.0
  %95 = vmatpush2.msra.mxu0 0.0
  %96 = vmatprep.subr.mxu0 0.0
  %97 = vmatpush2.msra.mxu0 0.0
  %98 = vmatprep.subr.mxu0 0.0
  %99 = vmatpush2.msra.mxu0 0.0
  %100 = vmatprep.subr.mxu0 0.0
  %101 = vmatpush2.msra.mxu0 0.0
  %102 = vmatprep.mubr.f32.mxu0 0.0
  %103 = vmatmul.mubr.f32.gmra.mxu0 %v36
  %v104 = vpop.f32.mrf.mxu0
  %v105 = vadd.f32 %v32, %v104
  %v106 = vpop.f32.mrf.mxu0
  %107 = vdwg.mxu0
  %v108 = vld [vmem:[%s0] sm:$0xff]
  %v109 = vld [vmem:[%s0 + $0x8] sm:$0xff]
  %v112 = vunpack.c.l.s4 1966171168
  %v113 = vunpack.c.0.s8 %v112
  %v114 = vlaneseq
  %v115 = vshrl.u32 %v114, 7
  %v116 = vsub.s32 %v113, %v115
  %v117 = vrot.slane %v105, %v116
  %v118 = vcombine.high %v117, %v117
  %v120 = vunpack.c.l.s4 1966171168
  %v121 = vunpack.c.0.s8 %v120
  %v122 = vlaneseq
  %v123 = vshrl.u32 %v122, 7
  %v124 = vsub.s32 %v121, %v123
  %v125 = vrot.slane %v117, %v124
  %v127 = vunpack.c.l.s4 1966171168
  %v128 = vunpack.c.0.s8 %v127
  %v129 = vlaneseq
  %v130 = vshrl.u32 %v129, 7
  %v131 = vsub.s32 %v128, %v130
  %v132 = vrot.slane %v118, %v131
  %v133 = vlaneseq
  %v134 = vshrl.u32 %v133, 7
  %v135 = vsub.s32 0, %v134
  %v136 = vrot.slane %v125, %v135
  %v137 = vlaneseq
  %v138 = vshrl.u32 %v137, 7
  %v139 = vsub.s32 0, %v138
  %v140 = vrot.slane %v132, %v139
  %v143 = vadd.f32 %v108, %v136
  %v144 = vadd.f32 %v109, %v140
  %v145 = vpack.c.bf16 %v144, %v143
  %v146 = vld [vmem:[%s4] sm:$0xf]
  %v147 = vld [vmem:[%s4 + $0x4] sm:$0xf]
  %v148 = vld [vmem:[%s4 + $0x8] sm:$0xf]
  %v149 = vld [vmem:[%s4 + $0xc] sm:$0xf]
  %v150 = vld [vmem:[%s5] sm:$0x1]
  %v152 = vlaneseq
  %v153 = vshrl.u32 %v152, 7
  %v154 = vsub.s32 0, %v153
  %v155 = vrot.slane %v150, %v154
  %v161 = vunpack.c.l.b16 %v146
  %v162 = vunpack.c.l.b16 %v147
  %v163 = vunpack.c.l.b16 %v148
  %v164 = vunpack.c.l.b16 %v149
  %v165 = vpack.c.b16 %v162, %v161
  %v166 = vpack.c.b16 %v164, %v163
  %vm169 = vcmask 261120
  %v171 = vsel %vm169, %v145, 0
  %173 = vmatprep.subr.bf16.mxu0 0
  %174 = vmatpush1.bf16.msra.mxu0 0
  %175 = vmatprep.subr.bf16.mxu0 0
  %176 = vmatpush1.bf16.msra.mxu0 0
  %177 = vmatprep.subr.bf16.mxu0 0
  %178 = vmatpush1.bf16.msra.mxu0 0
  %179 = vmatprep.subr.bf16.mxu0 0
  %180 = vmatpush1.bf16.msra.mxu0 0
  %181 = vmatprep.subr.bf16.mxu0 0
  %182 = vmatpush1.bf16.msra.mxu0 0
  %183 = vmatprep.subr.bf16.mxu0 0
  %184 = vmatpush1.bf16.msra.mxu0 0
  %185 = vmatprep.subr.bf16.mxu0 0
  %186 = vmatpush1.bf16.msra.mxu0 %v166
  %187 = vmatprep.subr.bf16.mxu0 0
  %188 = vmatpush1.bf16.msra.mxu0 %v165
  %189 = vmatprep.subr.bf16.mxu0 0
  %190 = vmatpush2.bf16.msra.mxu0 0
  %191 = vmatprep.subr.bf16.mxu0 0
  %192 = vmatpush2.bf16.msra.mxu0 0
  %193 = vmatprep.subr.bf16.mxu0 0
  %194 = vmatpush2.bf16.msra.mxu0 0
  %195 = vmatprep.subr.bf16.mxu0 0
  %196 = vmatpush2.bf16.msra.mxu0 0
  %197 = vmatprep.subr.bf16.mxu0 0
  %198 = vmatpush2.bf16.msra.mxu0 0
  %199 = vmatprep.subr.bf16.mxu0 0
  %200 = vmatpush2.bf16.msra.mxu0 0
  %201 = vmatprep.subr.bf16.mxu0 0
  %202 = vmatpush2.bf16.msra.mxu0 0
  %203 = vmatprep.subr.bf16.mxu0 0
  %204 = vmatpush2.bf16.msra.mxu0 0
  %205 = vmatprep.mubr.bf16.mxu0 0
  %206 = vmatmul.mubr.bf16.gmra.mxu0 %v171
  %v207 = vpop.f32.mrf.mxu0
  %v208 = vadd.f32 %v155, %v207
  %v209 = vpop.f32.mrf.mxu0
  %v210 = vpop.f32.mrf.mxu0
  %v211 = vadd.f32 %v155, %v210
  %v212 = vpop.f32.mrf.mxu0
  %213 = vdwg.mxu0
  %vm214 = vcmask 523264
  %215 = vst.msk [vmem:[%s6] sm:$0xff] %vm214, %v208
  %216 = vst.msk [vmem:[%s6 + $0x8] sm:$0xff] %vm214, %v211
  // Predicated region
  $region26: #{larimar_memory_vae_forward.7} parent=0 // pred_check
    _
  $region27: #{larimar_memory_vae_forward.7} parent=0 // pred_check_branch
    %218 = sbr.rel (0) target = $region29
  $region28: #{larimar_memory_vae_forward.7} parent=0 // pred_region
    _
  $region29: #{larimar_memory_vae_forward.7} parent=0 // pred_fallthru
    _
  // Predicated region
  $region30: #{larimar_memory_vae_forward.7} parent=0 // pred_check
    _
  $region31: #{larimar_memory_vae_forward.7} parent=0 // pred_check_branch
    %220 = sbr.rel (0) target = $region33
  $region32: #{larimar_memory_vae_forward.7} parent=0 // pred_region
    _
  $region33: #{larimar_memory_vae_forward.7} parent=0 // pred_fallthru
    _

</llo_original>
